<compile_context>
chip_gen: v7x
topology: tpu7x:2x2x1
jax: 0.10.0
libtpu: 0.0.40
codegen_flags: <defaults>
</compile_context>

<pallas_src>
import functools

import jax
import jax.numpy as jnp
import numpy as np
from jax.experimental import pallas as pl
from jax.experimental.pallas import tpu as pltpu


def _round_up(x, m):
    return ((x + m - 1) // m) * m


def _vmem_limit(working_set_bytes):
    """Per-generation VMEM limit with ~20% headroom for compiler scratch."""
    try:
        cap = getattr(pltpu.get_tpu_info(), "vmem_capacity_bytes", 128 << 20)
    except Exception:  # not on TPU / interpret mode
        cap = 128 << 20
    headroom = int(cap * 4 // 5)          # ~51 MiB on v7x, ~102 MiB on v5e/v6e
    return int(min(max(2 * working_set_bytes, 16 << 20), headroom))


def _pick_ff_tile(n_ff, cap):
    """Largest multiple-of-128 divisor of n_ff that is <= cap (or n_ff itself)."""
    if n_ff <= cap:
        return n_ff
    t = (cap // 128) * 128
    while t >= 128:
        if n_ff % t == 0:
            return t
        t -= 128
    return n_ff


def _pick_capacity_tile(slots):
    """TILE_C, C_PAD with minimal padding; TILE_C kept large (>=256 when tiling)."""
    c8 = _round_up(max(slots, 1), 8)
    if c8 <= 1024:
        return c8, c8
    t = 1024
    while t >= 256:
        if c8 % t == 0:
            return t, c8               # exact divisor -> zero capacity padding
        t -= 8
    return 1024, _round_up(c8, 1024)   # fall back: accept < 1 tile of padding


# ----------------------------- Pallas kernels ------------------------------ #

def _router_kernel(x_ref, w_ref, b_ref, route_ref, psum_ref, *, n_valid):
    # Per token-tile: switch linear + softmax -> argmax route + psum partial.
    t = pl.program_id(0)
    tile_n = x_ref.shape[0]
    n_experts = w_ref.shape[1]

    logits = jnp.dot(x_ref[...], w_ref[...], preferred_element_type=jnp.float32)
    logits = logits + b_ref[...]
    m = jnp.max(logits, axis=-1, keepdims=True)
    e = jnp.exp(logits - m)
    p = e / jnp.sum(e, axis=-1, keepdims=True)            # softmax probs (tile)

    # argmax over the lane (expert) axis -> first maximal index (like argmax).
    lane = jax.lax.broadcasted_iota(jnp.int32, p.shape, 1).astype(jnp.float32)
    is_max = p >= jnp.max(p, axis=-1, keepdims=True)
    route_f = jnp.min(jnp.where(is_max, lane, float(n_experts)),
                      axis=-1, keepdims=True)
    route_ref[...] = route_f.astype(jnp.int32)

    # probs.sum(0) per-tile partial; mask the ragged tail rows of the last tile.
    row = t * tile_n + jax.lax.broadcasted_iota(jnp.int32, p.shape, 0)
    p_valid = jnp.where(row < n_valid, p, 0.0)
    tile_sum = jnp.sum(p_valid, axis=0, keepdims=True)    # (1, E)
    # Emit an 8-row slab (row 0 holds the partial) so the out block is (8, E)-
    # aligned and the grid axis can stay "parallel" (megacore split on v7x).
    psum_ref[...] = jnp.broadcast_to(tile_sum, psum_ref.shape)


def _expert_mlp_kernel(counts_ref, x_ref, w1_ref, b1_ref, w2_ref, b2_ref,
                       o_ref, acc_ref):
    # One (expert, capacity-tile, n_ff-tile):
    #   Linear(d->n_ff chunk) -> exact GELU -> partial Linear(n_ff chunk->d),
    # accumulated in f32 VMEM; bias2 added and stored on the last n_ff chunk.
    e = pl.program_id(0)
    c = pl.program_id(1)
    f = pl.program_id(2)
    tile_c = x_ref.shape[0]

    @pl.when(c * tile_c < counts_ref[e])        # skip empty capacity tiles
    def _():
        @pl.when(f == 0)
        def _():
            acc_ref[...] = jnp.zeros_like(acc_ref)

        h = jnp.dot(x_ref[...], w1_ref[...], preferred_element_type=jnp.float32)
        h = jax.nn.gelu(h + b1_ref[...], approximate=False)     # nn.GELU() (erf)
        acc_ref[...] += jnp.dot(h.astype(w2_ref.dtype), w2_ref[...],
                                preferred_element_type=jnp.float32)

        @pl.when(f == pl.num_programs(2) - 1)
        def _():
            o_ref[...] = (acc_ref[...] + b2_ref[...]).astype(o_ref.dtype)


# ------------------------------ Python wrapper ------------------------------ #

def switch_feed_forward(x, params, *, capacity_factor=1.0, drop_tokens=True,
                        noise=0.1, noise_key=None, use_amp=False):
    B, S, d = x.shape
    x = x.astype(jnp.float32)
    if noise > 0:
        u = jax.random.uniform(noise_key, x.shape, jnp.float32,
                               1.0 - noise, 1.0 + noise)
        x = x * u
    N = B * S
    x_flat = x.reshape(N, d)

    w_sw, b_sw = params["switch_w"], params["switch_b"]      # (d, E), (1, E)
    w1, b1 = params["w1"], params["b1"]                      # (E, d, n_ff), (E, 1, n_ff)
    w2, b2 = params["w2"], params["b2"]                      # (E, n_ff, d), (E, 1, d)
    E = w_sw.shape[1]
    n_ff = w1.shape[-1]

    # ---------------- Router (Pallas, tiled over token tiles) ---------------- #
    TILE_N = min(1024, _round_up(N, 8))
    NT = pl.cdiv(N, TILE_N)                # no jnp.pad copy of x; ragged last tile

    router_ws = 4 * (2 * TILE_N * d + 2 * d * E + 2 * E
                     + 3 * TILE_N * E + 2 * TILE_N + 2 * 8 * E)
    route_col, psum_rows = pl.pallas_call(
        functools.partial(_router_kernel, n_valid=N),
        out_shape=(jax.ShapeDtypeStruct((N, 1), jnp.int32),
                   jax.ShapeDtypeStruct((8 * NT, E), jnp.float32)),
        grid=(NT,),
        in_specs=[pl.BlockSpec((TILE_N, d), lambda t: (t, 0)),
                  pl.BlockSpec((d, E), lambda t: (0, 0)),
                  pl.BlockSpec((1, E), lambda t: (0, 0))],
        out_specs=(pl.BlockSpec((TILE_N, 1), lambda t: (t, 0)),
                   pl.BlockSpec((8, E), lambda t: (t, 0))),
        compiler_params=pltpu.CompilerParams(
            dimension_semantics=("parallel",),
            vmem_limit_bytes=_vmem_limit(router_ws)),
        cost_estimate=pl.CostEstimate(
            flops=int(2 * N * d * E),
            transcendentals=int(N * E),
            bytes_accessed=int(4 * (N * d + d * E + E + N + 8 * NT * E))),
    )(x_flat, w_sw, b_sw)
    route = route_col[:, 0]                                   # (N,) int32
    probs_sum = psum_rows.reshape(NT, 8, E)[:, 0, :].sum(axis=0)   # (E,)

    # ------------- Routing bookkeeping (cheap index glue, plain JAX) --------- #
    onehot = (route[:, None] ==
              jnp.arange(E, dtype=jnp.int32)[None, :]).astype(jnp.int32)
    expert_counts = jnp.sum(onehot, axis=0)                   # counts BEFORE drop
    capacity = int(N * capacity_factor / E)
    pos = jnp.take_along_axis(jnp.cumsum(onehot, axis=0) - 1,
                              route[:, None], axis=1)[:, 0]
    # TODO(synk): with drop_tokens=False an expert may receive up to N tokens, so
    # the capacity-padded gather degenerates to (E, N, d); a sorted/grouped layout
    # with scalar-prefetched group offsets + in-kernel row DMA gather would avoid
    # that blow-up and the x_g/y_g HBM round-trip.
    slots = capacity if drop_tokens else N
    keep = pos < slots
    n_dropped = jnp.sum(jnp.logical_not(keep))
    kept_counts = jnp.minimum(expert_counts, slots).astype(jnp.int32)

    # --------- Gather kept tokens into capacity-padded per-expert rows ------- #
    TILE_C, c8 = _pick_capacity_tile(slots)
    C_PAD = _round_up(c8, TILE_C)
    CT = C_PAD // TILE_C
    cdtype = jnp.bfloat16 if use_amp else jnp.float32
    slot = jnp.where(keep, pos, C_PAD).astype(jnp.int32)      # C_PAD == OOB marker
    x_g = jnp.zeros((E, C_PAD, d), cdtype).at[route, slot].set(
        x_flat.astype(cdtype), mode="drop")

    # ------------ Expert MLPs (Pallas): only (capacity, d) per expert -------- #
    # d/n_ff ideally multiples of 256 (128 on v5e) for full MXU utilisation.
    TILE_F = _pick_ff_tile(n_ff, cap=2048 if use_amp else 1024)
    FT = n_ff // TILE_F
    w1c, w2c = w1.astype(cdtype), w2.astype(cdtype)
    bpe = jnp.dtype(cdtype).itemsize

    moe_ws = (2 * TILE_C * d * bpe                     # x tile (dbl buf)
              + 2 * 2 * d * TILE_F * bpe               # w1 + w2 blocks (dbl buf)
              + 2 * (TILE_F + d) * 4                   # biases (f32)
              + TILE_C * TILE_F * 4                    # GELU intermediate
              + TILE_C * d * 4                         # f32 accumulator
              + 2 * TILE_C * d * bpe)                  # out tile (dbl buf)
    y_g = pl.pallas_call(
        _expert_mlp_kernel,
        out_shape=jax.ShapeDtypeStruct((E, C_PAD, d), cdtype),
        grid_spec=pltpu.PrefetchScalarGridSpec(
            num_scalar_prefetch=1,
            grid=(E, CT, FT),          # expert outer, n_ff innermost (accumulate)
            in_specs=[
                pl.BlockSpec((pl.Squeezed(), TILE_C, d),
                             lambda e, c, f, cnt: (e, c, 0)),
                pl.BlockSpec((pl.Squeezed(), d, TILE_F),
                             lambda e, c, f, cnt: (e, 0, f)),
                pl.BlockSpec((pl.Squeezed(), 1, TILE_F),
                             lambda e, c, f, cnt: (e, 0, f)),
                pl.BlockSpec((pl.Squeezed(), TILE_F, d),
                             lambda e, c, f, cnt: (e, f, 0)),
                pl.BlockSpec((pl.Squeezed(), 1, d),
                             lambda e, c, f, cnt: (e, 0, 0)),
            ],
            out_specs=pl.BlockSpec((pl.Squeezed(), TILE_C, d),
                                   lambda e, c, f, cnt: (e, c, 0)),
            scratch_shapes=[pltpu.VMEM((TILE_C, d), jnp.float32)]),
        compiler_params=pltpu.CompilerParams(
            dimension_semantics=("parallel", "parallel", "arbitrary"),
            vmem_limit_bytes=_vmem_limit(moe_ws)),
        cost_estimate=pl.CostEstimate(
            flops=int(4 * E * C_PAD * d * n_ff),
            transcendentals=int(E * C_PAD * n_ff),
            bytes_accessed=int(bpe * (2 * E * C_PAD * d + 2 * E * CT * d * n_ff)
                               + 4 * E * (n_ff + d))),
    )(kept_counts, x_g, w1c, b1, w2c, b2)

    # ---- Scatter back: kept tokens get expert output, dropped pass x thru --- #
    y_tok = y_g[route, jnp.minimum(slot, C_PAD - 1)].astype(jnp.float32)  # (N, d)
    out_flat = jnp.where(keep[:, None], y_tok, x_flat)

    out = out_flat.reshape(B, S, d)
    # NOTE: `out * max_prob` is computed-but-discarded in the PyTorch code,
    # so no gate scaling is applied here either.
    return out, expert_counts.astype(jnp.float32), probs_sum, n_dropped


# ------------------------- deterministic parameters ------------------------- #

def init_params(key, d_model, n_ff, n_experts):
    ks = jax.random.split(key, 6)
    s_sw = 1.0 / np.sqrt(d_model)
    s1 = 1.0 / np.sqrt(d_model)
    s2 = 1.0 / np.sqrt(n_ff)
    return {
        "switch_w": jax.random.uniform(ks[0], (d_model, n_experts), jnp.float32, -s_sw, s_sw),
        "switch_b": jax.random.uniform(ks[1], (1, n_experts), jnp.float32, -s_sw, s_sw),
        "w1": jax.random.uniform(ks[2], (n_experts, d_model, n_ff), jnp.float32, -s1, s1),
        "b1": jax.random.uniform(ks[3], (n_experts, 1, n_ff), jnp.float32, -s1, s1),
        "w2": jax.random.uniform(ks[4], (n_experts, n_ff, d_model), jnp.float32, -s2, s2),
        "b2": jax.random.uniform(ks[5], (n_experts, 1, d_model), jnp.float32, -s2, s2),
    }


# ------------------------------ pure-JAX reference --------------------------- #

def reference_forward(x, params, *, capacity_factor, drop_tokens, noise, noise_key):
    B, S, d = x.shape
    x = x.astype(jnp.float32)
    if noise > 0:
        u = jax.random.uniform(noise_key, x.shape, jnp.float32,
                               1.0 - noise, 1.0 + noise)
        x = x * u
    N = B * S
    xf = x.reshape(N, d)
    E = params["switch_w"].shape[1]
    probs = jax.nn.softmax(xf @ params["switch_w"] + params["switch_b"], axis=-1)
    route = jnp.argmax(probs, axis=-1)
    onehot = (route[:, None] == jnp.arange(E)[None, :]).astype(jnp.int32)
    counts = onehot.sum(0)
    capacity = int(N * capacity_factor / E)
    pos = jnp.take_along_axis(jnp.cumsum(onehot, 0) - 1, route[:, None], 1)[:, 0]
    keep = (pos < capacity) if drop_tokens else jnp.ones((N,), bool)
    out = jnp.where(keep[:, None], 0.0, xf)
    for e in range(E):
        h = jax.nn.gelu(xf @ params["w1"][e] + params["b1"][e], approximate=False)
        y = h @ params["w2"][e] + params["b2"][e]
        out = out + jnp.where((keep & (route == e))[:, None], y, 0.0)
    n_dropped = jnp.sum(~keep)
    return out.reshape(B, S, d), counts.astype(jnp.float32), probs.sum(0), n_dropped


# ------------------------------------ main ----------------------------------- #

if __name__ == "__main__":
    key = jax.random.PRNGKey(0)
    k_param, k_x, k_noise = jax.random.split(key, 3)

    B, S, d_model, n_ff, n_experts = 2, 8, 32, 64, 4
    capacity_factor, drop_tokens, noise = 1.0, True, 0.1

    params = init_params(k_param, d_model, n_ff, n_experts)
    x = jax.random.normal(k_x, (B, S, d_model), jnp.float32)

    # f32 path: exact against the pure-JAX reference.
    out, counts, probs_sum, n_dropped = switch_feed_forward(
        x, params, capacity_factor=capacity_factor, drop_tokens=drop_tokens,
        noise=noise, noise_key=k_noise, use_amp=False)
    jax.block_until_ready(out)

    r_out, r_counts, r_psum, r_ndrop = reference_forward(
        x, params, capacity_factor=capacity_factor, drop_tokens=drop_tokens,
        noise=noise, noise_key=k_noise)

    np.testing.assert_allclose(np.asarray(out), np.asarray(r_out),
                               rtol=1e-5, atol=1e-5)
    np.testing.assert_allclose(np.asarray(counts), np.asarray(r_counts))
    np.testing.assert_allclose(np.asarray(probs_sum), np.asarray(r_psum),
                               rtol=1e-5, atol=1e-5)
    assert int(n_dropped) == int(r_ndrop)

    # bf16 (use_amp) path: identical routing, loose tolerance on the MLP output.
    out_amp, counts_amp, _, nd_amp = switch_feed_forward(
        x, params, capacity_factor=capacity_factor, drop_tokens=drop_tokens,
        noise=noise, noise_key=k_noise, use_amp=True)
    jax.block_until_ready(out_amp)
    np.testing.assert_allclose(np.asarray(counts_amp), np.asarray(r_counts))
    np.testing.assert_allclose(np.asarray(out_amp), np.asarray(r_out),
                               rtol=1e-1, atol=1e-1)
    assert int(nd_amp) == int(r_ndrop)

    print("KERNEL_OK")
</pallas_src>

<mosaic_0001>
module attributes {stable_mosaic.version = 11 : i64} {
  func.func @_router_kernel(%arg0: i32, %arg1: memref<16x32xf32, #tpu.memory_space<vmem>>, %arg2: memref<32x4xf32, #tpu.memory_space<vmem>>, %arg3: memref<1x4xf32, #tpu.memory_space<vmem>>, %arg4: memref<16x1xi32, #tpu.memory_space<vmem>>, %arg5: memref<8x4xf32, #tpu.memory_space<vmem>>) attributes {dimension_semantics = [#tpu.dimension_semantics<parallel>], iteration_bounds = array<i64: 1>, scalar_prefetch = 0 : i64, scratch_operands = 0 : i64, tpu.core_type = #tpu.core_type<tc>, window_params = [{transform_indices = @transform_0, window_bounds = array<i64: 16, 32>}, {pipeline_mode = #tpu.pipeline_mode<synchronous>, transform_indices = @transform_1, window_bounds = array<i64: 32, 4>}, {pipeline_mode = #tpu.pipeline_mode<synchronous>, transform_indices = @transform_2, window_bounds = array<i64: 1, 4>}, {transform_indices = @transform_3, window_bounds = array<i64: 16, 1>}, {transform_indices = @transform_4, window_bounds = array<i64: 8, 4>}]} {
    %c0 = arith.constant 0 : index
    %c0_0 = arith.constant 0 : index
    %0 = vector.load %arg1[%c0, %c0_0] : memref<16x32xf32, #tpu.memory_space<vmem>>, vector<16x32xf32>
    %c0_1 = arith.constant 0 : index
    %c0_2 = arith.constant 0 : index
    %1 = vector.load %arg2[%c0_1, %c0_2] : memref<32x4xf32, #tpu.memory_space<vmem>>, vector<32x4xf32>
    %cst = arith.constant dense<0.000000e+00> : vector<16x4xf32>
    %2 = tpu.matmul %0, %1, %cst {dimension_numbers = #tpu.dot_dimension_numbers<[1], [0], [0], [1], [0, 0, 1, 1], [], []>} : vector<16x32xf32>, vector<32x4xf32>, vector<16x4xf32> -> vector<16x4xf32>
    %c0_3 = arith.constant 0 : index
    %c0_4 = arith.constant 0 : index
    %3 = vector.load %arg3[%c0_3, %c0_4] : memref<1x4xf32, #tpu.memory_space<vmem>>, vector<1x4xf32>
    %4 = vector.broadcast %3 : vector<1x4xf32> to vector<16x4xf32>
    %5 = arith.addf %2, %4 : vector<16x4xf32>
    %cst_5 = arith.constant dense<0xFF800000> : vector<16xf32>
    %6 = vector.multi_reduction <maximumf>, %5, %cst_5 [1] : vector<16x4xf32> to vector<16xf32>
    %7 = vector.shape_cast %6 : vector<16xf32> to vector<16x1xf32>
    %8 = vector.broadcast %7 : vector<16x1xf32> to vector<16x4xf32>
    %9 = arith.subf %5, %8 : vector<16x4xf32>
    %10 = math.exp %9 : vector<16x4xf32>
    %cst_6 = arith.constant dense<0.000000e+00> : vector<16xf32>
    %11 = vector.multi_reduction <add>, %10, %cst_6 [1] : vector<16x4xf32> to vector<16xf32>
    %12 = vector.shape_cast %11 : vector<16xf32> to vector<16x1xf32>
    %13 = vector.broadcast %12 : vector<16x1xf32> to vector<16x4xf32>
    %14 = arith.divf %10, %13 : vector<16x4xf32>
    %15 = tpu.iota {dimensions = array<i32: 1>} : vector<16x4xi32>
    %16 = arith.sitofp %15 : vector<16x4xi32> to vector<16x4xf32>
    %cst_7 = arith.constant dense<0xFF800000> : vector<16xf32>
    %17 = vector.multi_reduction <maximumf>, %14, %cst_7 [1] : vector<16x4xf32> to vector<16xf32>
    %18 = vector.shape_cast %17 : vector<16xf32> to vector<16x1xf32>
    %19 = vector.broadcast %18 : vector<16x1xf32> to vector<16x4xf32>
    %20 = arith.cmpf oge, %14, %19 : vector<16x4xf32>
    %cst_8 = arith.constant 4.000000e+00 : f32
    %21 = vector.broadcast %cst_8 : f32 to vector<16x4xf32>
    %22 = arith.select %20, %16, %21 : vector<16x4xi1>, vector<16x4xf32>
    %cst_9 = arith.constant dense<0x7F800000> : vector<16xf32>
    %23 = vector.multi_reduction <minimumf>, %22, %cst_9 [1] : vector<16x4xf32> to vector<16xf32>
    %24 = vector.shape_cast %23 : vector<16xf32> to vector<16x1xf32>
    %25 = arith.fptosi %24 : vector<16x1xf32> to vector<16x1xi32>
    %c0_10 = arith.constant 0 : index
    %c0_11 = arith.constant 0 : index
    %26 = vector.load %arg4[%c0_10, %c0_11] : memref<16x1xi32, #tpu.memory_space<vmem>>, vector<16x1xi32>
    tpu.vector_store %arg4[%c0_10, %c0_11], %25 {strides = array<i32>} : memref<16x1xi32, #tpu.memory_space<vmem>>, vector<16x1xi32>,
    %c16_i32 = arith.constant 16 : i32
    %27 = arith.muli %arg0, %c16_i32 : i32
    %28 = tpu.iota {dimensions = array<i32: 0>} : vector<16x4xi32>
    %29 = vector.broadcast %27 : i32 to vector<16x4xi32>
    %30 = arith.addi %29, %28 : vector<16x4xi32>
    %c16_i32_12 = arith.constant 16 : i32
    %31 = vector.broadcast %c16_i32_12 : i32 to vector<16x4xi32>
    %32 = arith.cmpi slt, %30, %31 : vector<16x4xi32>
    %cst_13 = arith.constant 0.000000e+00 : f32
    %33 = vector.broadcast %cst_13 : f32 to vector<16x4xf32>
    %34 = arith.select %32, %14, %33 : vector<16x4xi1>, vector<16x4xf32>
    %cst_14 = arith.constant dense<0.000000e+00> : vector<4xf32>
    %35 = vector.multi_reduction <add>, %34, %cst_14 [0] : vector<16x4xf32> to vector<4xf32>
    %36 = vector.shape_cast %35 : vector<4xf32> to vector<1x4xf32>
    %37 = vector.shape_cast %36 : vector<1x4xf32> to vector<1x4xf32>
    %38 = vector.broadcast %37 : vector<1x4xf32> to vector<8x4xf32>
    %c0_15 = arith.constant 0 : index
    %c0_16 = arith.constant 0 : index
    %39 = vector.load %arg5[%c0_15, %c0_16] : memref<8x4xf32, #tpu.memory_space<vmem>>, vector<8x4xf32>
    tpu.vector_store %arg5[%c0_15, %c0_16], %38 {strides = array<i32>} : memref<8x4xf32, #tpu.memory_space<vmem>>, vector<8x4xf32>,
    return
  }
  func.func @transform_0(%arg0: i32) -> (i32, i32) {
    %c0_i32 = arith.constant 0 : i32
    %c0_i32_0 = arith.constant 0 : i32
    return %arg0, %c0_i32 : i32, i32
  }
  func.func @transform_1(%arg0: i32) -> (i32, i32) {
    %c0_i32 = arith.constant 0 : i32
    %c0_i32_0 = arith.constant 0 : i32
    %c0_i32_1 = arith.constant 0 : i32
    return %c0_i32, %c0_i32_0 : i32, i32
  }
  func.func @transform_2(%arg0: i32) -> (i32, i32) {
    %c0_i32 = arith.constant 0 : i32
    %c0_i32_0 = arith.constant 0 : i32
    %c0_i32_1 = arith.constant 0 : i32
    return %c0_i32, %c0_i32_0 : i32, i32
  }
  func.func @transform_3(%arg0: i32) -> (i32, i32) {
    %c0_i32 = arith.constant 0 : i32
    %c0_i32_0 = arith.constant 0 : i32
    return %arg0, %c0_i32 : i32, i32
  }
  func.func @transform_4(%arg0: i32) -> (i32, i32) {
    %c0_i32 = arith.constant 0 : i32
    %c0_i32_0 = arith.constant 0 : i32
    return %arg0, %c0_i32 : i32, i32
  }
}

</mosaic_0001>

<llo_original>
// kernel: tpu_custom_call.1
$region0: #{tpu_custom_call.1}
  #allocation0 [shape = 'u32[]', space=smem, size = 0x4, offset = 0x4, fixed_abs, tag = 'smem constant byte address 0x4 - core index']
  #allocation1 [shape = 'u32[144,128]{1,0:T(1,128)}', space=vmem, size = 0x12000, scoped, tag = 'internal scratch']
  %s0 = inlined_call_operand.vmem [shape: f32[16,32], index: 0, kind: input, shape index: {}]
  %s1 = inlined_call_operand.vmem [shape: f32[32,4], index: 1, kind: input, shape index: {}]
  %s2 = inlined_call_operand.vmem [shape: f32[1,4], index: 2, kind: input, shape index: {}]
  %s3 = inlined_call_operand.vmem [shape: s32[16,1], index: 3, kind: output, shape index: {0}]
  %s4 = inlined_call_operand.vmem [shape: f32[8,4], index: 4, kind: output, shape index: {1}]
  %5 = xla_tuple %s3, %s4
  %s6 = sld [smem:[#allocation0]]
  $region30: #{tpu_custom_call.1} parent=0
    _
  %s8 = ssub.s32 1, %s6
  %s9 = scalar_select 0, %s8, %s6
  // Predicated region
  $region2: #{tpu_custom_call.1} parent=0 // pred_check
    _
  $region3: #{tpu_custom_call.1} parent=0 // pred_check_branch
    %11 = sbr.rel (0) target = $region5
  $region4: #{tpu_custom_call.1} parent=0 // pred_region
    _
  $region5: #{tpu_custom_call.1} parent=0 // pred_fallthru
    _
  // Predicated region
  $region6: #{tpu_custom_call.1} parent=0 // pred_check
    _
  $region7: #{tpu_custom_call.1} parent=0 // pred_check_branch
    %13 = sbr.rel (0) target = $region9
  $region8: #{tpu_custom_call.1} parent=0 // pred_region
    _
  $region9: #{tpu_custom_call.1} parent=0 // pred_fallthru
    _
  // Predicated region
  $region10: #{tpu_custom_call.1} parent=0 // pred_check
    _
  $region11: #{tpu_custom_call.1} parent=0 // pred_check_branch
    %15 = sbr.rel (0) target = $region13
  $region12: #{tpu_custom_call.1} parent=0 // pred_region
    _
  $region13: #{tpu_custom_call.1} parent=0 // pred_fallthru
    _
  %v16 = vld [vmem:[%s0] sm:$0xff]
  %v17 = vld [vmem:[%s0 + $0x8] sm:$0xff]
  %v18 = vld [vmem:[%s1] sm:$0xff]
  %v19 = vld [vmem:[%s1 + $0x8] sm:$0xff]
  %v20 = vld [vmem:[%s1 + $0x10] sm:$0xff]
  %v21 = vld [vmem:[%s1 + $0x18] sm:$0xff]
  %v22 = vld [vmem:[%s2] sm:$0x1]
  %v24 = vlaneseq
  %v25 = vshrl.u32 %v24, 7
  %v26 = vsub.s32 0, %v25
  %v27 = vrot.slane %v22, %v26
  %vm29 = vcmask 261120
  %v31 = vsel %vm29, %v16, 0
  %v34 = vsel %vm29, %v17, 0
  %36 = vmatprep.subr.mxu0 0.0
  %37 = vmatpush1.msra.mxu0 %v18
  %38 = vmatprep.subr.mxu0 0.0
  %39 = vmatpush1.msra.mxu0 %v19
  %40 = vmatprep.subr.mxu0 0.0
  %41 = vmatpush1.msra.mxu0 %v20
  %42 = vmatprep.subr.mxu0 0.0
  %43 = vmatpush1.msra.mxu0 %v21
  %44 = vmatprep.subr.mxu0 0.0
  %45 = vmatpush1.msra.mxu0 0.0
  %46 = vmatprep.subr.mxu0 0.0
  %47 = vmatpush1.msra.mxu0 0.0
  %48 = vmatprep.subr.mxu0 0.0
  %49 = vmatpush1.msra.mxu0 0.0
  %50 = vmatprep.subr.mxu0 0.0
  %51 = vmatpush1.msra.mxu0 0.0
  %52 = vmatprep.subr.mxu0 0.0
  %53 = vmatpush1.msra.mxu0 0.0
  %54 = vmatprep.subr.mxu0 0.0
  %55 = vmatpush1.msra.mxu0 0.0
  %56 = vmatprep.subr.mxu0 0.0
  %57 = vmatpush1.msra.mxu0 0.0
  %58 = vmatprep.subr.mxu0 0.0
  %59 = vmatpush1.msra.mxu0 0.0
  %60 = vmatprep.subr.mxu0 0.0
  %61 = vmatpush1.msra.mxu0 0.0
  %62 = vmatprep.subr.mxu0 0.0
  %63 = vmatpush1.msra.mxu0 0.0
  %64 = vmatprep.subr.mxu0 0.0
  %65 = vmatpush1.msra.mxu0 0.0
  %66 = vmatprep.subr.mxu0 0.0
  %67 = vmatpush1.msra.mxu0 0.0
  %68 = vmatprep.subr.mxu0 0.0
  %69 = vmatpush1.msra.mxu0 0.0
  %70 = vmatprep.subr.mxu0 0.0
  %71 = vmatpush1.msra.mxu0 0.0
  %72 = vmatprep.subr.mxu0 0.0
  %73 = vmatpush1.msra.mxu0 0.0
  %74 = vmatprep.subr.mxu0 0.0
  %75 = vmatpush1.msra.mxu0 0.0
  %76 = vmatprep.subr.mxu0 0.0
  %77 = vmatpush1.msra.mxu0 0.0
  %78 = vmatprep.subr.mxu0 0.0
  %79 = vmatpush1.msra.mxu0 0.0
  %80 = vmatprep.subr.mxu0 0.0
  %81 = vmatpush1.msra.mxu0 0.0
  %82 = vmatprep.subr.mxu0 0.0
  %83 = vmatpush1.msra.mxu0 0.0
  %84 = vmatprep.subr.mxu0 0.0
  %85 = vmatpush1.msra.mxu0 0.0
  %86 = vmatprep.subr.mxu0 0.0
  %87 = vmatpush1.msra.mxu0 0.0
  %88 = vmatprep.subr.mxu0 0.0
  %89 = vmatpush1.msra.mxu0 0.0
  %90 = vmatprep.subr.mxu0 0.0
  %91 = vmatpush1.msra.mxu0 0.0
  %92 = vmatprep.subr.mxu0 0.0
  %93 = vmatpush1.msra.mxu0 0.0
  %94 = vmatprep.subr.mxu0 0.0
  %95 = vmatpush1.msra.mxu0 0.0
  %96 = vmatprep.subr.mxu0 0.0
  %97 = vmatpush1.msra.mxu0 0.0
  %98 = vmatprep.subr.mxu0 0.0
  %99 = vmatpush1.msra.mxu0 0.0
  %100 = vmatprep.mubr.f32.mxu0 0.0
  %101 = vmatmul.mubr.f32.gmra.mrb[0].mxu0 %v31
  %v102 = vpop.f32.mrb[0].mxu0
  %v103 = vadd.f32 %v27, %v102
  %v104 = vpop.f32.mrb[0].mxu0
  %105 = vmatprep.mubr.f32.mxu0 0.0
  %106 = vmatmul.mubr.f32.gmra.mrb[0].mxu0 %v34
  %v107 = vpop.f32.mrb[0].mxu0
  %v108 = vadd.f32 %v27, %v107
  %v109 = vpop.f32.mrb[0].mxu0
  %110 = vdwg.mxu0
  %vm111 = vcmask 31744
  %v112 = vsel %vm111, %v103, -inf
  %113 = vmax.xlane.f32.xlu0 %v112
  %v114 = vpop.xlane.xlu0 %113
  %v115 = vsel %vm111, %v108, -inf
  %116 = vmax.xlane.f32.xlu0 %v115
  %v117 = vpop.xlane.xlu0 %116
  %v118 = vsub.f32 %v103, %v114
  %v119 = vsub.f32 %v108, %v117
  %v120 = vmul.f32 %v118, 1.442695
  %v121 = vpow.pop %v120
  %v122 = vmul.f32 %v119, 1.442695
  %v123 = vpow.pop %v122
  %v124 = vsel %vm111, %v121, 0.0
  %125 = vadd.xlane.f32.xlu0 %v124
  %v126 = vpop.xlane.xlu0 %125
  %v127 = vsel %vm111, %v123, 0.0
  %128 = vadd.xlane.f32.xlu0 %v127
  %v129 = vpop.xlane.xlu0 %128
  %v130 = vrcp.pop %v126
  %v131 = vmul.f32 %v121, %v130
  %v132 = vrcp.pop %v129
  %v133 = vmul.f32 %v123, %v132
  %v134 = vlaneseq
  %v135 = vand.u32 %v134, 127
  %v136 = vcvt.s32.f32 %v135
  %v137 = vsel %vm111, %v131, -inf
  %138 = vmax.xlane.f32.xlu0 %v137
  %v139 = vpop.xlane.xlu0 %138
  %v140 = vsel %vm111, %v133, -inf
  %141 = vmax.xlane.f32.xlu0 %v140
  %v142 = vpop.xlane.xlu0 %141
  %vm143 = vcmp.ge.f32.partialorder %v131, %v139
  %vm144 = vcmp.ge.f32.partialorder %v133, %v142
  %v145 = vsel %vm143, %v136, 4.0
  %v146 = vsel %vm144, %v136, 4.0
  %v147 = vsel %vm111, %v145, inf
  %148 = vmin.xlane.f32.xlu0 %v147
  %v149 = vpop.xlane.xlu0 %148
  %v150 = vsel %vm111, %v146, inf
  %151 = vmin.xlane.f32.xlu0 %v150
  %v152 = vpop.xlane.xlu0 %151
  %v153 = vcvt.f32.s32.to.zero.pseudo %v149
  %v154 = vcvt.f32.s32.to.zero.pseudo %v152
  %vm155 = vcmask 7168
  %156 = vst.msk [vmem:[%s3] sm:$0xff] %vm155, %v153
  %157 = vst.msk [vmem:[%s3 + $0x8] sm:$0xff] %vm155, %v154
  %s158 = smul.u32 0, 16
  %v159 = vlaneseq
  %v160 = vshrl.u32 %v159, 7
  %v161 = vadd.s32 %v160, 8
  %v162 = vstv %s158
  %v163 = vadd.s32 %v162, %v160
  %v164 = vadd.s32 %v162, %v161
  %vm165 = vcmp.lt.s32.totalorder %v163, 16
  %vm166 = vcmp.lt.s32.totalorder %v164, 16
  %v167 = vsel %vm165, %v131, 0.0
  %v168 = vsel %vm166, %v133, 0.0
  %v169 = vsel %vm111, %v167, 0.0
  %v170 = vsel %vm111, %v168, 0.0
  %v171 = vadd.f32 %v169, %v170
  %v172 = vrot.slane %v171, 4
  %v173 = vadd.f32 %v171, %v172
  %v174 = vrot.slane %v173, 2
  %v175 = vadd.f32 %v173, %v174
  %v176 = vrot.slane %v175, 1
  %v177 = vadd.f32 %v175, %v176
  %178 = vst.msk [vmem:[%s4] sm:$0xff] %vm111, %v177
  // Predicated region
  $region14: #{tpu_custom_call.1} parent=0 // pred_check
    _
  $region15: #{tpu_custom_call.1} parent=0 // pred_check_branch
    %180 = sbr.rel (0) target = $region17
  $region16: #{tpu_custom_call.1} parent=0 // pred_region
    _
  $region17: #{tpu_custom_call.1} parent=0 // pred_fallthru
    _
  // Predicated region
  $region18: #{tpu_custom_call.1} parent=0 // pred_check
    _
  $region19: #{tpu_custom_call.1} parent=0 // pred_check_branch
    %182 = sbr.rel (0) target = $region21
  $region20: #{tpu_custom_call.1} parent=0 // pred_region
    _
  $region21: #{tpu_custom_call.1} parent=0 // pred_fallthru
    _
  // Predicated region
  $region22: #{tpu_custom_call.1} parent=0 // pred_check
    _
  $region23: #{tpu_custom_call.1} parent=0 // pred_check_branch
    %184 = sbr.rel (0) target = $region25
  $region24: #{tpu_custom_call.1} parent=0 // pred_region
    _
  $region25: #{tpu_custom_call.1} parent=0 // pred_fallthru
    _
  // Predicated region
  $region26: #{tpu_custom_call.1} parent=0 // pred_check
    _
  $region27: #{tpu_custom_call.1} parent=0 // pred_check_branch
    %186 = sbr.rel (0) target = $region29
  $region28: #{tpu_custom_call.1} parent=0 // pred_region
    _
  $region29: #{tpu_custom_call.1} parent=0 // pred_fallthru
    _

</llo_original>
